<compile_context>
chip_gen: v5e
topology: v5e:2x2
jax: 0.10.0
libtpu: 0.0.40
codegen_flags: <defaults>
</compile_context>

<pallas_src>
import functools
from typing import NamedTuple

import jax
import jax.numpy as jnp
from jax.experimental import pallas as pl
from jax.experimental.pallas import tpu as pltpu


def _round_up(x, m):
    return ((x + m - 1) // m) * m


def _choose_tiles(n, tm_cap, tk_cap):
    """Pick (tm, n_m_padded, tk, n_k_padded) for an n x n adjacency.

    tm / tk are multiples of 128; padded row / reduction extents are
    multiples of tm / tk respectively so the grid divides exactly (padded
    rows & columns are zero and contribute nothing).
    """
    tm_cap = max(128, (tm_cap // 128) * 128)
    tk_cap = max(128, (tk_cap // 128) * 128)
    n128 = _round_up(n, 128)

    # Row (output) tiling: big tiles, pad rows to a multiple of tm.
    tm = min(tm_cap, n128)
    n_m = _round_up(n, tm)

    # Reduction (K) tiling: pad to a multiple of `base` (bounded padding
    # waste), then the largest 128-multiple divisor <= tk_cap.
    if n128 <= tk_cap:
        tk = n128
        n_k = n128
    else:
        base = min(512, tk_cap)
        n_k = _round_up(n, base)
        tk = base
        cand = tk_cap
        while cand >= base:
            if n_k % cand == 0:
                tk = cand
                break
            cand -= 128
    return tm, n_m, tk, n_k


class PreparedAdjacency(NamedTuple):
    """Adjacency pre-padded + pre-cast once, reused across GCN layers."""
    adj: jax.Array   # (n_m, n_k) compute dtype, zero padded
    n: int           # original node count
    tm: int          # row tile
    tk: int          # reduction tile


def prepare_adjacency(adjacency_matrix, *, tm_cap=512, tk_cap=2048,
                      compute_dtype=jnp.bfloat16):
    """Pad + cast the (expensive, O(N^2)) adjacency once; reuse per layer."""
    n = adjacency_matrix.shape[0]
    assert adjacency_matrix.shape == (n, n)
    tm, n_m, tk, n_k = _choose_tiles(n, tm_cap, tk_cap)
    adj_p = jnp.zeros((n_m, n_k), compute_dtype)
    adj_p = adj_p.at[:n, :n].set(adjacency_matrix.astype(compute_dtype))
    return PreparedAdjacency(adj_p, n, tm, tk)


def _gcn_kernel(adj_ref, x_ref, w_ref, o_ref, acc_ref, *, tk, x_resident):
    # adj_ref: (TM, TK)              bf16 adjacency tile (HBM-streamed)
    # x_ref:   (N_K, D_in_p) resident OR (TK, D_in_p) streamed, bf16
    # w_ref:   (D_in_p, D_out_p)     f32 transposed linear weight (resident)
    # o_ref:   (TM, D_out_p)         output tile (written on last k step)
    # acc_ref: (TM, D_in_p)          f32 accumulator for A @ X
    k = pl.program_id(1)

    @pl.when(k == 0)
    def _():
        acc_ref[...] = jnp.zeros_like(acc_ref)

    if x_resident:
        start = pl.multiple_of(k * tk, tk)
        x_blk = x_ref[pl.ds(start, tk), :]
    else:
        x_blk = x_ref[...]

    acc_ref[...] += jnp.dot(adj_ref[...], x_blk,
                            preferred_element_type=jnp.float32)

    @pl.when(k == pl.num_programs(1) - 1)
    def _():
        # Epilogue in f32 (W kept resident in f32): h @ W^T, then ReLU.
        # Dropout is eval-mode identity.
        out = jnp.dot(acc_ref[...], w_ref[...],
                      preferred_element_type=jnp.float32)
        o_ref[...] = jnp.maximum(out, 0.0).astype(o_ref.dtype)


def gcn_layer_forward(node_embedding, adjacency, weight, *,
                      tm_cap=512, tk_cap=2048,
                      compute_dtype=jnp.bfloat16,
                      x_resident_max_bytes=4 * 1024 * 1024,
                      vmem_limit_bytes=32 * 1024 * 1024):
    """ReLU((A @ X) @ W^T) with eval-mode dropout (identity).

    node_embedding: [N, in_dim]
    adjacency:      [N, N] array, or a PreparedAdjacency (cache it across
                    layers -- the pad + bf16 cast of A is the expensive part).
    weight:         [out_dim, in_dim]   (nn.Linear weight, bias=False)
    """
    if not isinstance(adjacency, PreparedAdjacency):
        adjacency = prepare_adjacency(adjacency, tm_cap=tm_cap, tk_cap=tk_cap,
                                      compute_dtype=compute_dtype)
    adj_p, n, tm, tk = adjacency
    n_m, n_k = adj_p.shape

    N, d_in = node_embedding.shape
    d_out, d_in_w = weight.shape
    assert N == n, (N, n)
    assert d_in_w == d_in, (d_in_w, d_in)
    out_dtype = node_embedding.dtype
    adj_dtype = adj_p.dtype

    d_in_p = _round_up(d_in, 128)
    d_out_p = _round_up(d_out, 128)

    # Cheap per-call padding (O(N*d), vs. the O(N^2) adjacency handled above).
    x_p = jnp.zeros((n_k, d_in_p), adj_dtype).at[:N, :d_in].set(
        node_embedding.astype(adj_dtype))
    w_t_p = jnp.zeros((d_in_p, d_out_p), jnp.float32).at[:d_in, :d_out].set(
        weight.T.astype(jnp.float32))

    grid = (n_m // tm, n_k // tk)

    x_bytes = n_k * d_in_p * jnp.dtype(adj_dtype).itemsize
    x_resident = x_bytes <= x_resident_max_bytes
    if x_resident:
        # Whole X resident in VMEM (constant block index => fetched once);
        # sliced per k step inside the kernel.
        x_spec = pl.BlockSpec((n_k, d_in_p), lambda i, k: (0, 0))
    else:
        x_spec = pl.BlockSpec((tk, d_in_p), lambda i, k: (k, 0))

    kernel = functools.partial(_gcn_kernel, tk=tk, x_resident=x_resident)

    out_p = pl.pallas_call(
        kernel,
        out_shape=jax.ShapeDtypeStruct((n_m, d_out_p), out_dtype),
        grid_spec=pltpu.PrefetchScalarGridSpec(
            num_scalar_prefetch=0,
            grid=grid,
            in_specs=[
                pl.BlockSpec((tm, tk), lambda i, k: (i, k)),           # A tile
                x_spec,                                                # X
                pl.BlockSpec((d_in_p, d_out_p), lambda i, k: (0, 0)),  # W^T
            ],
            out_specs=pl.BlockSpec((tm, d_out_p), lambda i, k: (i, 0)),
            scratch_shapes=[pltpu.VMEM((tm, d_in_p), jnp.float32)],
        ),
        compiler_params=pltpu.CompilerParams(
            dimension_semantics=("parallel", "arbitrary"),
            vmem_limit_bytes=vmem_limit_bytes,
        ),
    )(adj_p, x_p, w_t_p)

    return out_p[:N, :d_out]


if __name__ == "__main__":
    key = jax.random.PRNGKey(0)

    def make_graph(k, n):
        a_raw = (jax.random.uniform(k, (n, n)) > 0.7).astype(jnp.float32)
        adj = a_raw + a_raw.T + jnp.eye(n, dtype=jnp.float32)
        return adj / jnp.sum(adj, axis=-1, keepdims=True)  # row-normalized f32

    def make_weight(k, d_in, d_out):
        bound = 1.0 / (d_in ** 0.5)
        return jax.random.uniform(k, (d_out, d_in),
                                  minval=-bound, maxval=bound,
                                  dtype=jnp.float32)

    def ref_layer(x, adj, w):
        h = jnp.matmul(adj, x, precision=jax.lax.Precision.HIGHEST)
        return jnp.maximum(
            jnp.matmul(h, w.T, precision=jax.lax.Precision.HIGHEST), 0.0)

    def check(out, ref, tag):
        assert out.shape == ref.shape, (tag, out.shape, ref.shape)
        err = float(jnp.max(jnp.abs(out - ref)))
        assert jnp.allclose(out, ref, atol=3e-2, rtol=3e-2), (tag, err)

    k1, k2, k3, k4, k5 = jax.random.split(key, 5)

    # 1) Small config consistent with the module (N=32 nodes, 16 -> 32).
    x1 = jax.random.normal(k1, (32, 16), dtype=jnp.float32)
    a1 = make_graph(k2, 32)
    w1 = make_weight(k3, 16, 32)
    out1 = jax.block_until_ready(gcn_layer_forward(x1, a1, w1))
    check(out1, ref_layer(x1, a1, w1), "single_tile")

    # 2) Two-layer GCN stack on a 300-node graph: adjacency prepared ONCE and
    #    reused for both layers (small tile caps force a 3x3 grid to exercise
    #    the k-accumulation + resident-X slicing path).
    x2 = jax.random.normal(k4, (300, 20), dtype=jnp.float32)
    a2 = make_graph(k5, 300)
    w2a = make_weight(jax.random.PRNGKey(1), 20, 40)
    w2b = make_weight(jax.random.PRNGKey(2), 40, 24)
    prep = prepare_adjacency(a2, tm_cap=128, tk_cap=128)
    h2 = gcn_layer_forward(x2, prep, w2a)
    out2 = jax.block_until_ready(gcn_layer_forward(h2, prep, w2b))
    ref_h2 = ref_layer(x2, a2, w2a)
    check(h2, ref_h2, "layer1")
    check(out2, ref_layer(ref_h2, a2, w2b), "layer2")

    # 3) Streamed-X fallback path (X forced out of VMEM residency).
    out3 = jax.block_until_ready(
        gcn_layer_forward(x2, prep, w2a, x_resident_max_bytes=0))
    check(out3, ref_h2, "streamed_x")

    print("KERNEL_OK")
</pallas_src>

<mosaic_0001>
module attributes {stable_mosaic.version = 11 : i64} {
  func.func @_gcn_kernel(%arg0: i32, %arg1: i32, %arg2: memref<128x128xbf16, #tpu.memory_space<vmem>>, %arg3: memref<128x128xbf16, #tpu.memory_space<vmem>>, %arg4: memref<128x128xf32, #tpu.memory_space<vmem>>, %arg5: memref<128x128xf32, #tpu.memory_space<vmem>>, %arg6: memref<128x128xf32, #tpu.memory_space<vmem>>) attributes {dimension_semantics = [#tpu.dimension_semantics<parallel>, #tpu.dimension_semantics<arbitrary>], iteration_bounds = array<i64: 1, 1>, scalar_prefetch = 0 : i64, scratch_operands = 1 : i64, tpu.core_type = #tpu.core_type<tc>, window_params = [{transform_indices = @transform_0, window_bounds = array<i64: 128, 128>}, {pipeline_mode = #tpu.pipeline_mode<synchronous>, transform_indices = @transform_1, window_bounds = array<i64: 128, 128>}, {pipeline_mode = #tpu.pipeline_mode<synchronous>, transform_indices = @transform_2, window_bounds = array<i64: 128, 128>}, {transform_indices = @transform_3, window_bounds = array<i64: 128, 128>}]} {
    %c0_i32 = arith.constant 0 : i32
    %0 = arith.cmpi eq, %arg1, %c0_i32 : i32
    %1 = arith.extui %0 : i1 to i32
    %c0_i32_0 = arith.constant 0 : i32
    %2 = arith.cmpi ne, %1, %c0_i32_0 : i32
    scf.if %2 {
      %cst_9 = arith.constant 0.000000e+00 : f32
      %15 = vector.broadcast %cst_9 : f32 to vector<128x128xf32>
      %c0_10 = arith.constant 0 : index
      %c0_11 = arith.constant 0 : index
      %16 = vector.load %arg6[%c0_10, %c0_11] : memref<128x128xf32, #tpu.memory_space<vmem>>, vector<128x128xf32>
      tpu.vector_store %arg6[%c0_10, %c0_11], %15 {strides = array<i32>} : memref<128x128xf32, #tpu.memory_space<vmem>>, vector<128x128xf32>,
    } else {
    }
    %c128_i32 = arith.constant 128 : i32
    %3 = arith.muli %arg1, %c128_i32 : i32
    %4 = tpu.assume_multiple %3, 128 : i32
    %5 = arith.index_cast %4 : i32 to index
    %c0 = arith.constant 0 : index
    %6 = vector.load %arg3[%5, %c0] : memref<128x128xbf16, #tpu.memory_space<vmem>>, vector<128x128xbf16>
    %c0_1 = arith.constant 0 : index
    %c0_2 = arith.constant 0 : index
    %7 = vector.load %arg6[%c0_1, %c0_2] : memref<128x128xf32, #tpu.memory_space<vmem>>, vector<128x128xf32>
    %c0_3 = arith.constant 0 : index
    %c0_4 = arith.constant 0 : index
    %8 = vector.load %arg2[%c0_3, %c0_4] : memref<128x128xbf16, #tpu.memory_space<vmem>>, vector<128x128xbf16>
    %cst = arith.constant dense<0.000000e+00> : vector<128x128xf32>
    %9 = tpu.matmul %8, %6, %cst {dimension_numbers = #tpu.dot_dimension_numbers<[1], [0], [0], [1], [0, 0, 1, 1], [], []>} : vector<128x128xbf16>, vector<128x128xbf16>, vector<128x128xf32> -> vector<128x128xf32>
    %10 = arith.addf %7, %9 : vector<128x128xf32>
    %c0_5 = arith.constant 0 : index
    %c0_6 = arith.constant 0 : index
    %11 = vector.load %arg6[%c0_5, %c0_6] : memref<128x128xf32, #tpu.memory_space<vmem>>, vector<128x128xf32>
    tpu.vector_store %arg6[%c0_5, %c0_6], %10 {strides = array<i32>} : memref<128x128xf32, #tpu.memory_space<vmem>>, vector<128x128xf32>,
    %c0_i32_7 = arith.constant 0 : i32
    %12 = arith.cmpi eq, %arg1, %c0_i32_7 : i32
    %13 = arith.extui %12 : i1 to i32
    %c0_i32_8 = arith.constant 0 : i32
    %14 = arith.cmpi ne, %13, %c0_i32_8 : i32
    scf.if %14 {
      %c0_9 = arith.constant 0 : index
      %c0_10 = arith.constant 0 : index
      %15 = vector.load %arg6[%c0_9, %c0_10] : memref<128x128xf32, #tpu.memory_space<vmem>>, vector<128x128xf32>
      %c0_11 = arith.constant 0 : index
      %c0_12 = arith.constant 0 : index
      %16 = vector.load %arg4[%c0_11, %c0_12] : memref<128x128xf32, #tpu.memory_space<vmem>>, vector<128x128xf32>
      %cst_13 = arith.constant dense<0.000000e+00> : vector<128x128xf32>
      %17 = tpu.matmul %15, %16, %cst_13 {dimension_numbers = #tpu.dot_dimension_numbers<[1], [0], [0], [1], [0, 0, 1, 1], [], []>} : vector<128x128xf32>, vector<128x128xf32>, vector<128x128xf32> -> vector<128x128xf32>
      %cst_14 = arith.constant 0.000000e+00 : f32
      %18 = vector.broadcast %cst_14 : f32 to vector<128x128xf32>
      %19 = arith.maximumf %17, %18 : vector<128x128xf32>
      %c0_15 = arith.constant 0 : index
      %c0_16 = arith.constant 0 : index
      %20 = vector.load %arg5[%c0_15, %c0_16] : memref<128x128xf32, #tpu.memory_space<vmem>>, vector<128x128xf32>
      tpu.vector_store %arg5[%c0_15, %c0_16], %19 {strides = array<i32>} : memref<128x128xf32, #tpu.memory_space<vmem>>, vector<128x128xf32>,
    } else {
    }
    return
  }
  func.func @transform_0(%arg0: i32, %arg1: i32) -> (i32, i32) {
    %c0_i32 = arith.constant 0 : i32
    return %arg0, %arg1 : i32, i32
  }
  func.func @transform_1(%arg0: i32, %arg1: i32) -> (i32, i32) {
    %c0_i32 = arith.constant 0 : i32
    %c0_i32_0 = arith.constant 0 : i32
    %c0_i32_1 = arith.constant 0 : i32
    return %c0_i32, %c0_i32_0 : i32, i32
  }
  func.func @transform_2(%arg0: i32, %arg1: i32) -> (i32, i32) {
    %c0_i32 = arith.constant 0 : i32
    %c0_i32_0 = arith.constant 0 : i32
    %c0_i32_1 = arith.constant 0 : i32
    return %c0_i32, %c0_i32_0 : i32, i32
  }
  func.func @transform_3(%arg0: i32, %arg1: i32) -> (i32, i32) {
    %c0_i32 = arith.constant 0 : i32
    %c0_i32_0 = arith.constant 0 : i32
    return %arg0, %c0_i32 : i32, i32
  }
}

</mosaic_0001>

<llo_original>
// kernel: tpu_custom_call.1
$region0: #{tpu_custom_call.1}
  #allocation0 [shape = 'u32[]', space=smem, size = 0x4, offset = 0x4, fixed_abs, tag = 'smem constant byte address 0x4 - core index']
  #allocation1 [shape = 'u32[72,128]{1,0:T(1,128)}', space=vmem, size = 0x9000, scoped, tag = 'internal scratch']
  #allocation2 [shape = 'f32[128,128]{1,0:T(8,128)}', space=vmem, size = 0x10000, scoped, tag = 'scratch operand']
  %s0 = inlined_call_operand.hbm [shape: bf16[128,128], index: 0, kind: input, shape index: {}]
  %s1 = inlined_call_operand.hbm [shape: bf16[128,128], index: 1, kind: input, shape index: {}]
  %s2 = inlined_call_operand.hbm [shape: f32[128,128], index: 2, kind: input, shape index: {}]
  %s3 = inlined_call_operand.hbm [shape: f32[128,128], index: 3, kind: output, shape index: {}]
  %s4 = sld [smem:[#allocation0]]
  $region42: #{tpu_custom_call.1} parent=0
    _
  %s6 = ssub.s32 1, %s4
  %s7 = scalar_select 0, %s6, %s4
  $region1: #{tpu_custom_call.1} parent=0
    #allocation3 [shape = 'u8[32768]{0}', space=vmem, size = 0x8000, scoped, tag = 'input window, operand 0, single buffered']
    #allocation4 [shape = 's32[1]{0}', space=sflag, size = 0x4, scoped, tag = 'scoped memory for tpu_custom_call.1']
    #allocation5 [shape = 's32[1]{0}', space=sflag, size = 0x4, scoped, tag = 'scoped memory for tpu_custom_call.1']
    #allocation6 [shape = 'u8[32768]{0}', space=vmem, size = 0x8000, scoped, tag = 'input window, operand 1, single buffered']
    #allocation7 [shape = 's32[1]{0}', space=sflag, size = 0x4, scoped, tag = 'scoped memory for tpu_custom_call.1']
    #allocation8 [shape = 'u8[65536]{0}', space=vmem, size = 0x10000, scoped, tag = 'input window, operand 2, single buffered']
    #allocation9 [shape = 'u8[65536]{0}', space=vmem, size = 0x10000, scoped, tag = 'output window, operand 0, single buffered']
    %8 = vsyncpa [#allocation4], 0
    %9 = vsyncpa [#allocation7], 0
    %10 = vsyncpa [#allocation5], 0
    // Predicated region
    $region2: #{tpu_custom_call.1} parent=1 // pred_check
      _
    $region3: #{tpu_custom_call.1} parent=1 // pred_check_branch
      %12 = sbr.rel (0) target = $region5
    $region4: #{tpu_custom_call.1} parent=1 // pred_region
      %14 = vsyncadd [#allocation4], 0
      %s15 = sshll.u32 %s0, 4
      %s16 = int_to_ptr.hbm [resolvable:$true] %s15
      %s17 = sshll.u32 [#allocation3], 4
      %s18 = int_to_ptr.vmem [resolvable:$true] %s17
      %23 = dma.hbm_to_vmem [thread:$0]  %s16, 1024, %s18, [#allocation4], 64, 64, 4
    $region5: #{tpu_custom_call.1} parent=1 // pred_fallthru
      _
    // Predicated region
    $region6: #{tpu_custom_call.1} parent=1 // pred_check
      _
    $region7: #{tpu_custom_call.1} parent=1 // pred_check_branch
      %25 = sbr.rel (0) target = $region9
    $region8: #{tpu_custom_call.1} parent=1 // pred_region
      %27 = vsyncadd [#allocation7], 0
      %s28 = sshll.u32 %s1, 4
      %s29 = int_to_ptr.hbm [resolvable:$true] %s28
      %s30 = sshll.u32 [#allocation6], 4
      %s31 = int_to_ptr.vmem [resolvable:$true] %s30
      %36 = dma.hbm_to_vmem [thread:$0]  %s29, 1024, %s31, [#allocation7], 64, 64, 4
    $region9: #{tpu_custom_call.1} parent=1 // pred_fallthru
      _
    // Predicated region
    $region10: #{tpu_custom_call.1} parent=1 // pred_check
      _
    $region11: #{tpu_custom_call.1} parent=1 // pred_check_branch
      %38 = sbr.rel (0) target = $region13
    $region12: #{tpu_custom_call.1} parent=1 // pred_region
      %40 = vsyncadd [#allocation7], 0
      %s41 = sshll.u32 %s2, 4
      %s42 = int_to_ptr.hbm [resolvable:$true] %s41
      %s43 = sshll.u32 [#allocation8], 4
      %s44 = int_to_ptr.vmem [resolvable:$true] %s43
      %49 = dma.hbm_to_vmem [thread:$0]  %s42, 2048, %s44, [#allocation7], 128, 128, 8
    $region13: #{tpu_custom_call.1} parent=1 // pred_fallthru
      _
    // Predicated region
    $region14: #{tpu_custom_call.1} parent=1 // pred_check
      _
    $region15: #{tpu_custom_call.1} parent=1 // pred_check_branch
      %51 = sbr.rel (0) target = $region17
    $region16: #{tpu_custom_call.1} parent=1 // pred_region
      %53 = dma.done [#allocation4], 1024
    $region17: #{tpu_custom_call.1} parent=1 // pred_fallthru
      _
    // Predicated region
    $region18: #{tpu_custom_call.1} parent=1 // pred_check
      _
    $region19: #{tpu_custom_call.1} parent=1 // pred_check_branch
      %55 = sbr.rel (0) target = $region21
    $region20: #{tpu_custom_call.1} parent=1 // pred_region
      %57 = dma.done [#allocation7], 1024
    $region21: #{tpu_custom_call.1} parent=1 // pred_fallthru
      _
    // Predicated region
    $region22: #{tpu_custom_call.1} parent=1 // pred_check
      _
    $region23: #{tpu_custom_call.1} parent=1 // pred_check_branch
      %59 = sbr.rel (0) target = $region25
    $region24: #{tpu_custom_call.1} parent=1 // pred_region
      %61 = dma.done [#allocation7], 2048
    $region25: #{tpu_custom_call.1} parent=1 // pred_fallthru
      _
    %p62 = scmp.eq.s32.totalorder 0, 0
    // Predicated region
    $region26: #{tpu_custom_call.1} parent=1 // pred_check
      %p63 = pneg %p62
    $region27: #{tpu_custom_call.1} parent=1 // pred_check_branch
      %65 = sbr.rel (%p63) target = $region29
    $region28: #{tpu_custom_call.1} parent=1 // pred_region
      %66 = vst [vmem:[#allocation2] sm:$0xff] 0.0
      %67 = vst [vmem:[#allocation2 + $0x8] sm:$0xff] 0.0
      %68 = vst [vmem:[#allocation2 + $0x10] sm:$0xff] 0.0
      %69 = vst [vmem:[#allocation2 + $0x18] sm:$0xff] 0.0
      %70 = vst [vmem:[#allocation2 + $0x20] sm:$0xff] 0.0
      %71 = vst [vmem:[#allocation2 + $0x28] sm:$0xff] 0.0
      %72 = vst [vmem:[#allocation2 + $0x30] sm:$0xff] 0.0
      %73 = vst [vmem:[#allocation2 + $0x38] sm:$0xff] 0.0
      %74 = vst [vmem:[#allocation2 + $0x40] sm:$0xff] 0.0
      %75 = vst [vmem:[#allocation2 + $0x48] sm:$0xff] 0.0
      %76 = vst [vmem:[#allocation2 + $0x50] sm:$0xff] 0.0
      %77 = vst [vmem:[#allocation2 + $0x58] sm:$0xff] 0.0
      %78 = vst [vmem:[#allocation2 + $0x60] sm:$0xff] 0.0
      %79 = vst [vmem:[#allocation2 + $0x68] sm:$0xff] 0.0
      %80 = vst [vmem:[#allocation2 + $0x70] sm:$0xff] 0.0
      %81 = vst [vmem:[#allocation2 + $0x78] sm:$0xff] 0.0
    $region29: #{tpu_custom_call.1} parent=1 // pred_fallthru
      _
    %s82 = smul.u32 0, 128
    %s83 = sshra.s32 %s82, 3
    %s84 = sand.u32 %s82, 7
    %s85 = smul.addr %s83, 4
    %s86 = scalar_lea.vmem [#allocation6], %s85
    %v87 = vld [vmem:[%s86] sm:$0xf]
    %v88 = vld [vmem:[%s86 + $0x4] sm:$0xf]
    %v89 = vld [vmem:[%s86 + $0x8] sm:$0xf]
    %v90 = vld [vmem:[%s86 + $0xc] sm:$0xf]
    %v91 = vld [vmem:[%s86 + $0x10] sm:$0xf]
    %v92 = vld [vmem:[%s86 + $0x14] sm:$0xf]
    %v93 = vld [vmem:[%s86 + $0x18] sm:$0xf]
    %v94 = vld [vmem:[%s86 + $0x1c] sm:$0xf]
    %v95 = vld [vmem:[%s86 + $0x20] sm:$0xf]
    %v96 = vld [vmem:[%s86 + $0x24] sm:$0xf]
    %v97 = vld [vmem:[%s86 + $0x28] sm:$0xf]
    %v98 = vld [vmem:[%s86 + $0x2c] sm:$0xf]
    %v99 = vld [vmem:[%s86 + $0x30] sm:$0xf]
    %v100 = vld [vmem:[%s86 + $0x34] sm:$0xf]
    %v101 = vld [vmem:[%s86 + $0x38] sm:$0xf]
    %v102 = vld [vmem:[%s86 + $0x3c] sm:$0xf]
    %v103 = vld [vmem:[#allocation2] sm:$0xff]
    %v104 = vld [vmem:[#allocation2 + $0x8] sm:$0xff]
    %v105 = vld [vmem:[#allocation2 + $0x10] sm:$0xff]
    %v106 = vld [vmem:[#allocation2 + $0x18] sm:$0xff]
    %v107 = vld [vmem:[#allocation2 + $0x20] sm:$0xff]
    %v108 = vld [vmem:[#allocation2 + $0x28] sm:$0xff]
    %v109 = vld [vmem:[#allocation2 + $0x30] sm:$0xff]
    %v110 = vld [vmem:[#allocation2 + $0x38] sm:$0xff]
    %v111 = vld [vmem:[#allocation2 + $0x40] sm:$0xff]
    %v112 = vld [vmem:[#allocation2 + $0x48] sm:$0xff]
    %v113 = vld [vmem:[#allocation2 + $0x50] sm:$0xff]
    %v114 = vld [vmem:[#allocation2 + $0x58] sm:$0xff]
    %v115 = vld [vmem:[#allocation2 + $0x60] sm:$0xff]
    %v116 = vld [vmem:[#allocation2 + $0x68] sm:$0xff]
    %v117 = vld [vmem:[#allocation2 + $0x70] sm:$0xff]
    %v118 = vld [vmem:[#allocation2 + $0x78] sm:$0xff]
    %v119 = vld [vmem:[#allocation3] sm:$0xf]
    %v120 = vld [vmem:[#allocation3 + $0x4] sm:$0xf]
    %v121 = vld [vmem:[#allocation3 + $0x8] sm:$0xf]
    %v122 = vld [vmem:[#allocation3 + $0xc] sm:$0xf]
    %v123 = vld [vmem:[#allocation3 + $0x10] sm:$0xf]
    %v124 = vld [vmem:[#allocation3 + $0x14] sm:$0xf]
    %v125 = vld [vmem:[#allocation3 + $0x18] sm:$0xf]
    %v126 = vld [vmem:[#allocation3 + $0x1c] sm:$0xf]
    %v127 = vld [vmem:[#allocation3 + $0x20] sm:$0xf]
    %v128 = vld [vmem:[#allocation3 + $0x24] sm:$0xf]
    %v129 = vld [vmem:[#allocation3 + $0x28] sm:$0xf]
    %v130 = vld [vmem:[#allocation3 + $0x2c] sm:$0xf]
    %v131 = vld [vmem:[#allocation3 + $0x30] sm:$0xf]
    %v132 = vld [vmem:[#allocation3 + $0x34] sm:$0xf]
    %v133 = vld [vmem:[#allocation3 + $0x38] sm:$0xf]
    %v134 = vld [vmem:[#allocation3 + $0x3c] sm:$0xf]
    %v151 = vunpack.c.l.b16 %v119
    %v152 = vunpack.c.l.b16 %v120
    %v153 = vunpack.c.l.b16 %v121
    %v154 = vunpack.c.l.b16 %v122
    %v155 = vunpack.c.l.b16 %v123
    %v156 = vunpack.c.l.b16 %v124
    %v157 = vunpack.c.l.b16 %v125
    %v158 = vunpack.c.l.b16 %v126
    %v159 = vunpack.c.l.b16 %v127
    %v160 = vunpack.c.l.b16 %v128
    %v161 = vunpack.c.l.b16 %v129
    %v162 = vunpack.c.l.b16 %v130
    %v163 = vunpack.c.l.b16 %v131
    %v164 = vunpack.c.l.b16 %v132
    %v165 = vunpack.c.l.b16 %v133
    %v166 = vunpack.c.l.b16 %v134
    %v167 = vpack.c.b16 %v152, %v151
    %v168 = vpack.c.b16 %v154, %v153
    %v169 = vpack.c.b16 %v156, %v155
    %v170 = vpack.c.b16 %v158, %v157
    %v171 = vpack.c.b16 %v160, %v159
    %v172 = vpack.c.b16 %v162, %v161
    %v173 = vpack.c.b16 %v164, %v163
    %v174 = vpack.c.b16 %v166, %v165
    %v199 = vunpack.c.l.b16 %v87
    %v200 = vunpack.c.l.b16 %v88
    %v201 = vunpack.c.l.b16 %v89
    %v202 = vunpack.c.l.b16 %v90
    %v203 = vunpack.c.l.b16 %v91
    %v204 = vunpack.c.l.b16 %v92
    %v205 = vunpack.c.l.b16 %v93
    %v206 = vunpack.c.l.b16 %v94
    %v207 = vunpack.c.l.b16 %v95
    %v208 = vunpack.c.l.b16 %v96
    %v209 = vunpack.c.l.b16 %v97
    %v210 = vunpack.c.l.b16 %v98
    %v211 = vunpack.c.l.b16 %v99
    %v212 = vunpack.c.l.b16 %v100
    %v213 = vunpack.c.l.b16 %v101
    %v214 = vunpack.c.l.b16 %v102
    %v215 = vpack.c.b16 %v200, %v199
    %v216 = vpack.c.b16 %v202, %v201
    %v217 = vpack.c.b16 %v204, %v203
    %v218 = vpack.c.b16 %v206, %v205
    %v219 = vpack.c.b16 %v208, %v207
    %v220 = vpack.c.b16 %v210, %v209
    %v221 = vpack.c.b16 %v212, %v211
    %v222 = vpack.c.b16 %v214, %v213
    %231 = vmatpush.bf16.msra.mxu0 %v222
    %232 = vmatpush.bf16.msra.mxu0 %v221
    %233 = vmatpush.bf16.msra.mxu0 %v220
    %234 = vmatpush.bf16.msra.mxu0 %v219
    %235 = vmatpush.bf16.msra.mxu0 %v218
    %236 = vmatpush.bf16.msra.mxu0 %v217
    %237 = vmatpush.bf16.msra.mxu0 %v216
    %238 = vmatpush.bf16.msra.mxu0 %v215
    %239 = vmatmul.bf16.gmra.mxu0 %v167
    %v240 = vpop.f32.mrf.mxu0
    %v241 = vadd.f32 0.0, %v240
    %v242 = vpop.f32.mrf.mxu0
    %v243 = vadd.f32 0.0, %v242
    %244 = vmatmul.bf16.gmra.mxu0 %v168
    %v245 = vpop.f32.mrf.mxu0
    %v246 = vadd.f32 0.0, %v245
    %v247 = vpop.f32.mrf.mxu0
    %v248 = vadd.f32 0.0, %v247
    %249 = vmatmul.bf16.gmra.mxu0 %v169
    %v250 = vpop.f32.mrf.mxu0
    %v251 = vadd.f32 0.0, %v250
    %v252 = vpop.f32.mrf.mxu0
    %v253 = vadd.f32 0.0, %v252
    %254 = vmatmul.bf16.gmra.mxu0 %v170
    %v255 = vpop.f32.mrf.mxu0
    %v256 = vadd.f32 0.0, %v255
    %v257 = vpop.f32.mrf.mxu0
    %v258 = vadd.f32 0.0, %v257
    %259 = vmatmul.bf16.gmra.mxu0 %v171
    %v260 = vpop.f32.mrf.mxu0
    %v261 = vadd.f32 0.0, %v260
    %v262 = vpop.f32.mrf.mxu0
    %v263 = vadd.f32 0.0, %v262
    %264 = vmatmul.bf16.gmra.mxu0 %v172
    %v265 = vpop.f32.mrf.mxu0
    %v266 = vadd.f32 0.0, %v265
    %v267 = vpop.f32.mrf.mxu0
    %v268 = vadd.f32 0.0, %v267
    %269 = vmatmul.bf16.gmra.mxu0 %v173
    %v270 = vpop.f32.mrf.mxu0
    %v271 = vadd.f32 0.0, %v270
    %v272 = vpop.f32.mrf.mxu0
    %v273 = vadd.f32 0.0, %v272
    %274 = vmatmul.bf16.gmra.mxu0 %v174
    %v275 = vpop.f32.mrf.mxu0
    %v276 = vadd.f32 0.0, %v275
    %v277 = vpop.f32.mrf.mxu0
    %v278 = vadd.f32 0.0, %v277
    %279 = vdwg.mxu0
    %v280 = vadd.f32 %v103, %v241
    %v281 = vadd.f32 %v104, %v243
    %v282 = vadd.f32 %v105, %v246
    %v283 = vadd.f32 %v106, %v248
    %v284 = vadd.f32 %v107, %v251
    %v285 = vadd.f32 %v108, %v253
    %v286 = vadd.f32 %v109, %v256
    %v287 = vadd.f32 %v110, %v258
    %v288 = vadd.f32 %v111, %v261
    %v289 = vadd.f32 %v112, %v263
    %v290 = vadd.f32 %v113, %v266
    %v291 = vadd.f32 %v114, %v268
    %v292 = vadd.f32 %v115, %v271
    %v293 = vadd.f32 %v116, %v273
    %v294 = vadd.f32 %v117, %v276
    %v295 = vadd.f32 %v118, %v278
    %296 = vst [vmem:[#allocation2] sm:$0xff] %v280
    %297 = vst [vmem:[#allocation2 + $0x8] sm:$0xff] %v281
    %298 = vst [vmem:[#allocation2 + $0x10] sm:$0xff] %v282
    %299 = vst [vmem:[#allocation2 + $0x18] sm:$0xff] %v283
    %300 = vst [vmem:[#allocation2 + $0x20] sm:$0xff] %v284
    %301 = vst [vmem:[#allocation2 + $0x28] sm:$0xff] %v285
    %302 = vst [vmem:[#allocation2 + $0x30] sm:$0xff] %v286
    %303 = vst [vmem:[#allocation2 + $0x38] sm:$0xff] %v287
    %304 = vst [vmem:[#allocation2 + $0x40] sm:$0xff] %v288
    %305 = vst [vmem:[#allocation2 + $0x48] sm:$0xff] %v289
    %306 = vst [vmem:[#allocation2 + $0x50] sm:$0xff] %v290
    %307 = vst [vmem:[#allocation2 + $0x58] sm:$0xff] %v291
    %308 = vst [vmem:[#allocation2 + $0x60] sm:$0xff] %v292
    %309 = vst [vmem:[#allocation2 + $0x68] sm:$0xff] %v293
    %310 = vst [vmem:[#allocation2 + $0x70] sm:$0xff] %v294
    %311 = vst [vmem:[#allocation2 + $0x78] sm:$0xff] %v295
    // Predicated region
    $region30: #{tpu_custom_call.1} parent=1 // pred_check
      %p312 = pneg %p62
    $region31: #{tpu_custom_call.1} parent=1 // pred_check_branch
      %314 = sbr.rel (%p312) target = $region33
    $region32: #{tpu_custom_call.1} parent=1 // pred_region
      %v315 = vld [vmem:[#allocation2] sm:$0xff]
      %v316 = vld [vmem:[#allocation2 + $0x8] sm:$0xff]
      %v317 = vld [vmem:[#allocation2 + $0x10] sm:$0xff]
      %v318 = vld [vmem:[#allocation2 + $0x18] sm:$0xff]
      %v319 = vld [vmem:[#allocation2 + $0x20] sm:$0xff]
      %v320 = vld [vmem:[#allocation2 + $0x28] sm:$0xff]
      %v321 = vld [vmem:[#allocation2 + $0x30] sm:$0xff]
      %v322 = vld [vmem:[#allocation2 + $0x38] sm:$0xff]
      %v323 = vld [vmem:[#allocation2 + $0x40] sm:$0xff]
      %v324 = vld [vmem:[#allocation2 + $0x48] sm:$0xff]
      %v325 = vld [vmem:[#allocation2 + $0x50] sm:$0xff]
      %v326 = vld [vmem:[#allocation2 + $0x58] sm:$0xff]
      %v327 = vld [vmem:[#allocation2 + $0x60] sm:$0xff]
      %v328 = vld [vmem:[#allocation2 + $0x68] sm:$0xff]
      %v329 = vld [vmem:[#allocation2 + $0x70] sm:$0xff]
      %v330 = vld [vmem:[#allocation2 + $0x78] sm:$0xff]
      %v331 = vld [vmem:[#allocation8] sm:$0xff]
      %v332 = vld [vmem:[#allocation8 + $0x8] sm:$0xff]
      %v333 = vld [vmem:[#allocation8 + $0x10] sm:$0xff]
      %v334 = vld [vmem:[#allocation8 + $0x18] sm:$0xff]
      %v335 = vld [vmem:[#allocation8 + $0x20] sm:$0xff]
      %v336 = vld [vmem:[#allocation8 + $0x28] sm:$0xff]
      %v337 = vld [vmem:[#allocation8 + $0x30] sm:$0xff]
      %v338 = vld [vmem:[#allocation8 + $0x38] sm:$0xff]
      %v339 = vld [vmem:[#allocation8 + $0x40] sm:$0xff]
      %v340 = vld [vmem:[#allocation8 + $0x48] sm:$0xff]
      %v341 = vld [vmem:[#allocation8 + $0x50] sm:$0xff]
      %v342 = vld [vmem:[#allocation8 + $0x58] sm:$0xff]
      %v343 = vld [vmem:[#allocation8 + $0x60] sm:$0xff]
      %v344 = vld [vmem:[#allocation8 + $0x68] sm:$0xff]
      %v345 = vld [vmem:[#allocation8 + $0x70] sm:$0xff]
      %v346 = vld [vmem:[#allocation8 + $0x78] sm:$0xff]
      %347 = vmatpush.msra.mxu0 %v346
      %348 = vmatpush.msra.mxu0 %v345
      %349 = vmatpush.msra.mxu0 %v344
      %350 = vmatpush.msra.mxu0 %v343
      %351 = vmatpush.msra.mxu0 %v342
      %352 = vmatpush.msra.mxu0 %v341
      %353 = vmatpush.msra.mxu0 %v340
      %354 = vmatpush.msra.mxu0 %v339
      %355 = vmatpush.msra.mxu0 %v338
      %356 = vmatpush.msra.mxu0 %v337
      %357 = vmatpush.msra.mxu0 %v336
      %358 = vmatpush.msra.mxu0 %v335
      %359 = vmatpush.msra.mxu0 %v334
      %360 = vmatpush.msra.mxu0 %v333
      %361 = vmatpush.msra.mxu0 %v332
      %362 = vmatpush.msra.mxu0 %v331
      %363 = vmatmul.f32.gmra.mxu0 %v315
      %v364 = vpop.f32.mrf.mxu0
      %v365 = vadd.f32 0.0, %v364
      %366 = vmatmul.f32.gmra.mxu0 %v316
      %v367 = vpop.f32.mrf.mxu0
      %v368 = vadd.f32 0.0, %v367
      %369 = vmatmul.f32.gmra.mxu0 %v317
      %v370 = vpop.f32.mrf.mxu0
      %v371 = vadd.f32 0.0, %v370
      %372 = vmatmul.f32.gmra.mxu0 %v318
      %v373 = vpop.f32.mrf.mxu0
      %v374 = vadd.f32 0.0, %v373
      %375 = vmatmul.f32.gmra.mxu0 %v319
      %v376 = vpop.f32.mrf.mxu0
      %v377 = vadd.f32 0.0, %v376
      %378 = vmatmul.f32.gmra.mxu0 %v320
      %v379 = vpop.f32.mrf.mxu0
      %v380 = vadd.f32 0.0, %v379
      %381 = vmatmul.f32.gmra.mxu0 %v321
      %v382 = vpop.f32.mrf.mxu0
      %v383 = vadd.f32 0.0, %v382
      %384 = vmatmul.f32.gmra.mxu0 %v322
      %v385 = vpop.f32.mrf.mxu0
      %v386 = vadd.f32 0.0, %v385
      %387 = vmatmul.f32.gmra.mxu0 %v323
      %v388 = vpop.f32.mrf.mxu0
      %v389 = vadd.f32 0.0, %v388
      %390 = vmatmul.f32.gmra.mxu0 %v324
      %v391 = vpop.f32.mrf.mxu0
      %v392 = vadd.f32 0.0, %v391
      %393 = vmatmul.f32.gmra.mxu0 %v325
      %v394 = vpop.f32.mrf.mxu0
      %v395 = vadd.f32 0.0, %v394
      %396 = vmatmul.f32.gmra.mxu0 %v326
      %v397 = vpop.f32.mrf.mxu0
      %v398 = vadd.f32 0.0, %v397
      %399 = vmatmul.f32.gmra.mxu0 %v327
      %v400 = vpop.f32.mrf.mxu0
      %v401 = vadd.f32 0.0, %v400
      %402 = vmatmul.f32.gmra.mxu0 %v328
      %v403 = vpop.f32.mrf.mxu0
      %v404 = vadd.f32 0.0, %v403
      %405 = vmatmul.f32.gmra.mxu0 %v329
      %v406 = vpop.f32.mrf.mxu0
      %v407 = vadd.f32 0.0, %v406
      %408 = vmatmul.f32.gmra.mxu0 %v330
      %v409 = vpop.f32.mrf.mxu0
      %v410 = vadd.f32 0.0, %v409
      %411 = vdwg.mxu0
      %v412 = vmax.f32 %v365, 0.0
      %v413 = vmax.f32 %v368, 0.0
      %v414 = vmax.f32 %v371, 0.0
      %v415 = vmax.f32 %v374, 0.0
      %v416 = vmax.f32 %v377, 0.0
      %v417 = vmax.f32 %v380, 0.0
      %v418 = vmax.f32 %v383, 0.0
      %v419 = vmax.f32 %v386, 0.0
      %v420 = vmax.f32 %v389, 0.0
      %v421 = vmax.f32 %v392, 0.0
      %v422 = vmax.f32 %v395, 0.0
      %v423 = vmax.f32 %v398, 0.0
      %v424 = vmax.f32 %v401, 0.0
      %v425 = vmax.f32 %v404, 0.0
      %v426 = vmax.f32 %v407, 0.0
      %v427 = vmax.f32 %v410, 0.0
      %428 = vst [vmem:[#allocation9] sm:$0xff] %v412
      %429 = vst [vmem:[#allocation9 + $0x8] sm:$0xff] %v413
      %430 = vst [vmem:[#allocation9 + $0x10] sm:$0xff] %v414
      %431 = vst [vmem:[#allocation9 + $0x18] sm:$0xff] %v415
      %432 = vst [vmem:[#allocation9 + $0x20] sm:$0xff] %v416
      %433 = vst [vmem:[#allocation9 + $0x28] sm:$0xff] %v417
      %434 = vst [vmem:[#allocation9 + $0x30] sm:$0xff] %v418
      %435 = vst [vmem:[#allocation9 + $0x38] sm:$0xff] %v419
      %436 = vst [vmem:[#allocation9 + $0x40] sm:$0xff] %v420
      %437 = vst [vmem:[#allocation9 + $0x48] sm:$0xff] %v421
      %438 = vst [vmem:[#allocation9 + $0x50] sm:$0xff] %v422
      %439 = vst [vmem:[#allocation9 + $0x58] sm:$0xff] %v423
      %440 = vst [vmem:[#allocation9 + $0x60] sm:$0xff] %v424
      %441 = vst [vmem:[#allocation9 + $0x68] sm:$0xff] %v425
      %442 = vst [vmem:[#allocation9 + $0x70] sm:$0xff] %v426
      %443 = vst [vmem:[#allocation9 + $0x78] sm:$0xff] %v427
    $region33: #{tpu_custom_call.1} parent=1 // pred_fallthru
      _
    // Predicated region
    $region34: #{tpu_custom_call.1} parent=1 // pred_check
      _
    $region35: #{tpu_custom_call.1} parent=1 // pred_check_branch
      %445 = sbr.rel (0) target = $region37
    $region36: #{tpu_custom_call.1} parent=1 // pred_region
      %447 = vsyncadd [#allocation5], 0
      %s448 = sshll.u32 [#allocation9], 4
      %s449 = int_to_ptr.vmem [resolvable:$true] %s448
      %s450 = sshll.u32 %s3, 4
      %s451 = int_to_ptr.hbm [resolvable:$true] %s450
      %456 = dma.vmem_to_hbm [thread:$0]  %s449, 2048, %s451, [#allocation5], 128, 128, 8
    $region37: #{tpu_custom_call.1} parent=1 // pred_fallthru
      _
    // Predicated region
    $region38: #{tpu_custom_call.1} parent=1 // pred_check
      _
    $region39: #{tpu_custom_call.1} parent=1 // pred_check_branch
      %458 = sbr.rel (0) target = $region41
    $region40: #{tpu_custom_call.1} parent=1 // pred_region
      %460 = dma.done [#allocation5], 2048
    $region41: #{tpu_custom_call.1} parent=1 // pred_fallthru
      _
    %461 = vsyncpa [#allocation4], 1
    %462 = vsyncpa [#allocation7], 1
    %463 = vsyncpa [#allocation5], 1

</llo_original>
